<compile_context>
chip_gen: v5e
topology: v5e:2x2
jax: 0.10.0
libtpu: 0.0.40
codegen_flags: <defaults>
</compile_context>

<pallas_src>
import jax
import jax.numpy as jnp
from jax.experimental import pallas as pl
from jax.experimental.pallas import tpu as pltpu


def _round_up(x, m):
    return ((x + m - 1) // m) * m


def policy_kernel(x_ref, w1t_ref, b1_ref, w2t_ref, b2_ref, out_ref):
    # ---- affine1: [TB, obs_n] @ [obs_n, H] on the MXU (bf16 in, f32 acc) ----
    xb = x_ref[...]
    if xb.dtype != jnp.bfloat16:          # accept bf16 x natively; cast only if f32
        xb = xb.astype(jnp.bfloat16)
    h = jnp.dot(xb, w1t_ref[...], preferred_element_type=jnp.float32)
    h = h + b1_ref[...]

    # TODO(synk): dropout is identity here (eval-mode semantics). A training-mode
    # kernel would draw the keep-mask with pltpu.prng_seed / pltpu.prng_random_bits
    # and scale by 1/(1-p) before the ReLU.

    # ---- ReLU (VPU, f32) ----
    h = jnp.maximum(h, 0.0)

    # ---- affine2: [TB, H] @ [H, act_n] (no lane padding; act_n is the full dim) ----
    s = jnp.dot(h.astype(jnp.bfloat16), w2t_ref[...],
                preferred_element_type=jnp.float32)
    s = s + b2_ref[...]

    # ---- softmax over the action axis (dim=1), max-stabilized, f32 ----
    m = jnp.max(s, axis=1, keepdims=True)
    e = jnp.exp(s - m)
    denom = jnp.sum(e, axis=1, keepdims=True)
    inv = pl.reciprocal(denom, approx=True)   # EUP slot, off the VALU path
    inv = inv * (2.0 - denom * inv)           # one Newton step: rows sum to 1 ~1e-6
    out_ref[...] = (e * inv).astype(out_ref.dtype)


def prepare_params(w1, b1, w2, b2):
    """One-time parameter prep (hoisted out of the per-call forward):
    transpose to row-major matmul layout and cast matmul operands to bf16."""
    hidden, obs_n = w1.shape           # PyTorch nn.Linear layout: [out, in]
    act_n, hidden2 = w2.shape
    assert hidden2 == hidden
    w1t = jnp.transpose(w1).astype(jnp.bfloat16)      # [obs_n, H]
    w2t = jnp.transpose(w2).astype(jnp.bfloat16)      # [H, act_n]
    b1_2d = b1.astype(jnp.float32).reshape(1, hidden)
    b2_2d = b2.astype(jnp.float32).reshape(1, act_n)
    return w1t, b1_2d, w2t, b2_2d


def policy_forward(x, w1t, b1_2d, w2t, b2_2d, *, tb=None, core_parallel=False):
    """x: [B, obs_n] (f32 or bf16); params from prepare_params.
    Returns [B, act_n] f32 probabilities."""
    B, obs_n = x.shape
    hidden = w1t.shape[1]
    act_n = w2t.shape[1]

    # Batch tile: default 1024 (per-grid-step overhead is the binding cost at
    # these tiny K's), multiple of 16 for bf16 sublane packing, clamped to B.
    if tb is None:
        tb = 1024
    tb = max(16, _round_up(min(tb, _round_up(B, 16)), 16))
    num_tiles = pl.cdiv(B, tb)

    # Ragged batches (B % tb != 0) are handled by Pallas' partial last block:
    # no wrapper-side jnp.pad (which would add a full extra HBM pass over x).

    flops = 2 * B * (obs_n * hidden + hidden * act_n)
    transcendentals = B * (act_n + 1)                 # exp + reciprocal
    bytes_accessed = (x.size * x.dtype.itemsize
                      + w1t.size * 2 + w2t.size * 2
                      + b1_2d.size * 4 + b2_2d.size * 4
                      + B * act_n * 4)

    # v7x: set core_parallel=True (and make num_tiles even) so both TCs get
    # balanced halves of the batch axis. PARALLEL is the safe single-TC default.
    batch_sem = pltpu.CORE_PARALLEL if core_parallel else pltpu.PARALLEL

    out = pl.pallas_call(
        policy_kernel,
        out_shape=jax.ShapeDtypeStruct((B, act_n), jnp.float32),
        grid_spec=pltpu.PrefetchScalarGridSpec(
            num_scalar_prefetch=0,
            grid=(num_tiles,),
            in_specs=[
                pl.BlockSpec((tb, obs_n), lambda i: (i, 0)),      # x tile
                pl.BlockSpec((obs_n, hidden), lambda i: (0, 0)),  # W1^T (resident)
                pl.BlockSpec((1, hidden), lambda i: (0, 0)),      # b1   (resident)
                pl.BlockSpec((hidden, act_n), lambda i: (0, 0)),  # W2^T (resident)
                pl.BlockSpec((1, act_n), lambda i: (0, 0)),       # b2   (resident)
            ],
            out_specs=pl.BlockSpec((tb, act_n), lambda i: (i, 0)),
        ),
        compiler_params=pltpu.CompilerParams(
            dimension_semantics=(batch_sem,)),
        cost_estimate=pl.CostEstimate(
            flops=flops, transcendentals=transcendentals,
            bytes_accessed=bytes_accessed),
    )(x, w1t, b1_2d, w2t, b2_2d)
    return out


def init_params(key, obs_n, act_n, hidden_size):
    """Deterministic init mimicking nn.Linear's U(-1/sqrt(fan_in), 1/sqrt(fan_in))."""
    k1, k2, k3, k4 = jax.random.split(key, 4)
    bound1 = 1.0 / jnp.sqrt(obs_n)
    bound2 = 1.0 / jnp.sqrt(hidden_size)
    w1 = jax.random.uniform(k1, (hidden_size, obs_n), jnp.float32, -bound1, bound1)
    b1 = jax.random.uniform(k2, (hidden_size,), jnp.float32, -bound1, bound1)
    w2 = jax.random.uniform(k3, (act_n, hidden_size), jnp.float32, -bound2, bound2)
    b2 = jax.random.uniform(k4, (act_n,), jnp.float32, -bound2, bound2)
    return w1, b1, w2, b2


if __name__ == "__main__":
    # Small shapes consistent with the module's forward: x is [batch, obs_n].
    batch, obs_n, act_n, hidden_size = 64, 16, 8, 128

    key = jax.random.PRNGKey(0)
    kx, kp, kx2 = jax.random.split(key, 3)
    x = jax.random.normal(kx, (batch, obs_n), jnp.float32)
    w1, b1, w2, b2 = init_params(kp, obs_n, act_n, hidden_size)

    # One-time parameter prep (transpose / bf16) hoisted out of the forward.
    w1t, b1_2d, w2t, b2_2d = prepare_params(w1, b1, w2, b2)

    fwd = jax.jit(policy_forward, static_argnames=("tb", "core_parallel"))

    def reference(xin):
        # Reference with matching bf16-matmul / f32-accumulate numerics.
        xb = xin.astype(jnp.bfloat16)
        h_ref = jnp.maximum(
            jnp.dot(xb, w1.T.astype(jnp.bfloat16),
                    preferred_element_type=jnp.float32) + b1, 0.0)
        s_ref = jnp.dot(h_ref.astype(jnp.bfloat16), w2.T.astype(jnp.bfloat16),
                        preferred_element_type=jnp.float32) + b2
        return jax.nn.softmax(s_ref, axis=1)

    # 1) Aligned batch, single tile (default tb clamps to 64 -> grid=(1,)).
    probs = jax.block_until_ready(fwd(x, w1t, b1_2d, w2t, b2_2d))
    assert probs.shape == (batch, act_n)
    assert jnp.allclose(jnp.sum(probs, axis=1), 1.0, atol=1e-4), "rows must sum to 1"
    assert jnp.allclose(probs, reference(x), atol=5e-3, rtol=5e-3), "mismatch vs ref"

    # 2) Multi-tile batch grid (tb=16 -> grid=(4,)), exercising the pipeline.
    probs2 = jax.block_until_ready(fwd(x, w1t, b1_2d, w2t, b2_2d, tb=16))
    assert jnp.allclose(probs2, reference(x), atol=5e-3, rtol=5e-3), "multi-tile mismatch"

    # 3) Ragged batch (B=50, tb=16 -> partial last block), no wrapper-side pad.
    x3 = jax.random.normal(kx2, (50, obs_n), jnp.float32)
    probs3 = jax.block_until_ready(fwd(x3, w1t, b1_2d, w2t, b2_2d, tb=16))
    assert probs3.shape == (50, act_n)
    assert jnp.allclose(jnp.sum(probs3, axis=1), 1.0, atol=1e-4), "ragged rows must sum to 1"
    assert jnp.allclose(probs3, reference(x3), atol=5e-3, rtol=5e-3), "ragged mismatch"

    print("KERNEL_OK")
</pallas_src>

<mosaic_0001>
module attributes {stable_mosaic.version = 11 : i64} {
  func.func @policy_kernel(%arg0: i32, %arg1: memref<64x16xf32, #tpu.memory_space<vmem>>, %arg2: memref<16x128xbf16, #tpu.memory_space<vmem>>, %arg3: memref<1x128xf32, #tpu.memory_space<vmem>>, %arg4: memref<128x8xbf16, #tpu.memory_space<vmem>>, %arg5: memref<1x8xf32, #tpu.memory_space<vmem>>, %arg6: memref<64x8xf32, #tpu.memory_space<vmem>>) attributes {dimension_semantics = [#tpu.dimension_semantics<parallel>], iteration_bounds = array<i64: 1>, scalar_prefetch = 0 : i64, scratch_operands = 0 : i64, tpu.core_type = #tpu.core_type<tc>, window_params = [{transform_indices = @transform_0, window_bounds = array<i64: 64, 16>}, {pipeline_mode = #tpu.pipeline_mode<synchronous>, transform_indices = @transform_1, window_bounds = array<i64: 16, 128>}, {pipeline_mode = #tpu.pipeline_mode<synchronous>, transform_indices = @transform_2, window_bounds = array<i64: 1, 128>}, {pipeline_mode = #tpu.pipeline_mode<synchronous>, transform_indices = @transform_3, window_bounds = array<i64: 128, 8>}, {pipeline_mode = #tpu.pipeline_mode<synchronous>, transform_indices = @transform_4, window_bounds = array<i64: 1, 8>}, {transform_indices = @transform_5, window_bounds = array<i64: 64, 8>}]} {
    %c0 = arith.constant 0 : index
    %c0_0 = arith.constant 0 : index
    %0 = vector.load %arg1[%c0, %c0_0] : memref<64x16xf32, #tpu.memory_space<vmem>>, vector<64x16xf32>
    %1 = arith.truncf %0 : vector<64x16xf32> to vector<64x16xbf16>
    %c0_1 = arith.constant 0 : index
    %c0_2 = arith.constant 0 : index
    %2 = vector.load %arg2[%c0_1, %c0_2] : memref<16x128xbf16, #tpu.memory_space<vmem>>, vector<16x128xbf16>
    %cst = arith.constant dense<0.000000e+00> : vector<64x128xf32>
    %3 = tpu.matmul %1, %2, %cst {dimension_numbers = #tpu.dot_dimension_numbers<[1], [0], [0], [1], [0, 0, 1, 1], [], []>} : vector<64x16xbf16>, vector<16x128xbf16>, vector<64x128xf32> -> vector<64x128xf32>
    %c0_3 = arith.constant 0 : index
    %c0_4 = arith.constant 0 : index
    %4 = vector.load %arg3[%c0_3, %c0_4] : memref<1x128xf32, #tpu.memory_space<vmem>>, vector<1x128xf32>
    %5 = vector.broadcast %4 : vector<1x128xf32> to vector<64x128xf32>
    %6 = arith.addf %3, %5 : vector<64x128xf32>
    %cst_5 = arith.constant 0.000000e+00 : f32
    %7 = vector.broadcast %cst_5 : f32 to vector<64x128xf32>
    %8 = arith.maximumf %6, %7 : vector<64x128xf32>
    %9 = arith.truncf %8 : vector<64x128xf32> to vector<64x128xbf16>
    %c0_6 = arith.constant 0 : index
    %c0_7 = arith.constant 0 : index
    %10 = vector.load %arg4[%c0_6, %c0_7] : memref<128x8xbf16, #tpu.memory_space<vmem>>, vector<128x8xbf16>
    %cst_8 = arith.constant dense<0.000000e+00> : vector<64x8xf32>
    %11 = tpu.matmul %9, %10, %cst_8 {dimension_numbers = #tpu.dot_dimension_numbers<[1], [0], [0], [1], [0, 0, 1, 1], [], []>} : vector<64x128xbf16>, vector<128x8xbf16>, vector<64x8xf32> -> vector<64x8xf32>
    %c0_9 = arith.constant 0 : index
    %c0_10 = arith.constant 0 : index
    %12 = vector.load %arg5[%c0_9, %c0_10] : memref<1x8xf32, #tpu.memory_space<vmem>>, vector<1x8xf32>
    %13 = vector.broadcast %12 : vector<1x8xf32> to vector<64x8xf32>
    %14 = arith.addf %11, %13 : vector<64x8xf32>
    %cst_11 = arith.constant dense<0xFF800000> : vector<64xf32>
    %15 = vector.multi_reduction <maximumf>, %14, %cst_11 [1] : vector<64x8xf32> to vector<64xf32>
    %16 = vector.shape_cast %15 : vector<64xf32> to vector<64x1xf32>
    %17 = vector.broadcast %16 : vector<64x1xf32> to vector<64x8xf32>
    %18 = arith.subf %14, %17 : vector<64x8xf32>
    %19 = math.exp %18 : vector<64x8xf32>
    %cst_12 = arith.constant dense<0.000000e+00> : vector<64xf32>
    %20 = vector.multi_reduction <add>, %19, %cst_12 [1] : vector<64x8xf32> to vector<64xf32>
    %21 = vector.shape_cast %20 : vector<64xf32> to vector<64x1xf32>
    %22 = tpu.reciprocal %21 {approx = true} : vector<64x1xf32> -> vector<64x1xf32>
    %23 = arith.mulf %21, %22 : vector<64x1xf32>
    %cst_13 = arith.constant 2.000000e+00 : f32
    %24 = vector.broadcast %cst_13 : f32 to vector<64x1xf32>
    %25 = arith.subf %24, %23 : vector<64x1xf32>
    %26 = arith.mulf %22, %25 : vector<64x1xf32>
    %27 = vector.broadcast %26 : vector<64x1xf32> to vector<64x8xf32>
    %28 = arith.mulf %19, %27 : vector<64x8xf32>
    %c0_14 = arith.constant 0 : index
    %c0_15 = arith.constant 0 : index
    %29 = vector.load %arg6[%c0_14, %c0_15] : memref<64x8xf32, #tpu.memory_space<vmem>>, vector<64x8xf32>
    tpu.vector_store %arg6[%c0_14, %c0_15], %28 {strides = array<i32>} : memref<64x8xf32, #tpu.memory_space<vmem>>, vector<64x8xf32>,
    return
  }
  func.func @transform_0(%arg0: i32) -> (i32, i32) {
    %c0_i32 = arith.constant 0 : i32
    %c0_i32_0 = arith.constant 0 : i32
    return %arg0, %c0_i32 : i32, i32
  }
  func.func @transform_1(%arg0: i32) -> (i32, i32) {
    %c0_i32 = arith.constant 0 : i32
    %c0_i32_0 = arith.constant 0 : i32
    %c0_i32_1 = arith.constant 0 : i32
    return %c0_i32, %c0_i32_0 : i32, i32
  }
  func.func @transform_2(%arg0: i32) -> (i32, i32) {
    %c0_i32 = arith.constant 0 : i32
    %c0_i32_0 = arith.constant 0 : i32
    %c0_i32_1 = arith.constant 0 : i32
    return %c0_i32, %c0_i32_0 : i32, i32
  }
  func.func @transform_3(%arg0: i32) -> (i32, i32) {
    %c0_i32 = arith.constant 0 : i32
    %c0_i32_0 = arith.constant 0 : i32
    %c0_i32_1 = arith.constant 0 : i32
    return %c0_i32, %c0_i32_0 : i32, i32
  }
  func.func @transform_4(%arg0: i32) -> (i32, i32) {
    %c0_i32 = arith.constant 0 : i32
    %c0_i32_0 = arith.constant 0 : i32
    %c0_i32_1 = arith.constant 0 : i32
    return %c0_i32, %c0_i32_0 : i32, i32
  }
  func.func @transform_5(%arg0: i32) -> (i32, i32) {
    %c0_i32 = arith.constant 0 : i32
    %c0_i32_0 = arith.constant 0 : i32
    return %arg0, %c0_i32 : i32, i32
  }
}

</mosaic_0001>

<llo_original>
// kernel: policy_forward.1
$region0: #{policy_forward.1}
  #allocation0 [shape = 'u32[]', space=smem, size = 0x4, offset = 0x4, fixed_abs, tag = 'smem constant byte address 0x4 - core index']
  #allocation1 [shape = 'u32[72,128]{1,0:T(1,128)}', space=vmem, size = 0x9000, scoped, tag = 'internal scratch']
  %s0 = inlined_call_operand.vmem [shape: f32[64,16], index: 0, kind: input, shape index: {}]
  %s1 = inlined_call_operand.vmem [shape: bf16[16,128], index: 1, kind: input, shape index: {}]
  %s2 = inlined_call_operand.vmem [shape: f32[1,128], index: 2, kind: input, shape index: {}]
  %s3 = inlined_call_operand.vmem [shape: bf16[128,8], index: 3, kind: input, shape index: {}]
  %s4 = inlined_call_operand.vmem [shape: f32[1,8], index: 4, kind: input, shape index: {}]
  %s5 = inlined_call_operand.vmem [shape: f32[64,8], index: 5, kind: output, shape index: {}]
  %s6 = sld [smem:[#allocation0]]
  $region30: #{policy_forward.1} parent=0
    _
  %s8 = ssub.s32 1, %s6
  %s9 = scalar_select 0, %s8, %s6
  // Predicated region
  $region2: #{policy_forward.1} parent=0 // pred_check
    _
  $region3: #{policy_forward.1} parent=0 // pred_check_branch
    %11 = sbr.rel (0) target = $region5
  $region4: #{policy_forward.1} parent=0 // pred_region
    _
  $region5: #{policy_forward.1} parent=0 // pred_fallthru
    _
  // Predicated region
  $region6: #{policy_forward.1} parent=0 // pred_check
    _
  $region7: #{policy_forward.1} parent=0 // pred_check_branch
    %13 = sbr.rel (0) target = $region9
  $region8: #{policy_forward.1} parent=0 // pred_region
    _
  $region9: #{policy_forward.1} parent=0 // pred_fallthru
    _
  // Predicated region
  $region10: #{policy_forward.1} parent=0 // pred_check
    _
  $region11: #{policy_forward.1} parent=0 // pred_check_branch
    %15 = sbr.rel (0) target = $region13
  $region12: #{policy_forward.1} parent=0 // pred_region
    _
  $region13: #{policy_forward.1} parent=0 // pred_fallthru
    _
  // Predicated region
  $region14: #{policy_forward.1} parent=0 // pred_check
    _
  $region15: #{policy_forward.1} parent=0 // pred_check_branch
    %17 = sbr.rel (0) target = $region17
  $region16: #{policy_forward.1} parent=0 // pred_region
    _
  $region17: #{policy_forward.1} parent=0 // pred_fallthru
    _
  // Predicated region
  $region18: #{policy_forward.1} parent=0 // pred_check
    _
  $region19: #{policy_forward.1} parent=0 // pred_check_branch
    %19 = sbr.rel (0) target = $region21
  $region20: #{policy_forward.1} parent=0 // pred_region
    _
  $region21: #{policy_forward.1} parent=0 // pred_fallthru
    _
  %v21 = vld [vmem:[%s0] sm:$0xff]
  %v22 = vld [vmem:[%s0 + $0x8] sm:$0xff]
  %v23 = vld [vmem:[%s0 + $0x10] sm:$0xff]
  %v24 = vld [vmem:[%s0 + $0x18] sm:$0xff]
  %v25 = vld [vmem:[%s0 + $0x20] sm:$0xff]
  %v26 = vld [vmem:[%s0 + $0x28] sm:$0xff]
  %v27 = vld [vmem:[%s0 + $0x30] sm:$0xff]
  %v28 = vld [vmem:[%s0 + $0x38] sm:$0xff]
  %v29 = vpack.c.bf16 %v22, %v21
  %v30 = vpack.c.bf16 %v24, %v23
  %v31 = vpack.c.bf16 %v26, %v25
  %v32 = vpack.c.bf16 %v28, %v27
  %v33 = vld [vmem:[%s1] sm:$0xf]
  %v34 = vld [vmem:[%s1 + $0x4] sm:$0xf]
  %v35 = vld [vmem:[%s2] sm:$0x1]
  %v37 = vperm.slane %v35, 0
  %v41 = vunpack.c.l.b16 %v33
  %v42 = vunpack.c.l.b16 %v34
  %v43 = vpack.c.b16 %v42, %v41
  %vm45 = vcmask 130048
  %v47 = vsel %vm45, %v29, 0
  %v50 = vsel %vm45, %v30, 0
  %v53 = vsel %vm45, %v31, 0
  %v56 = vsel %vm45, %v32, 0
  %58 = vmatpush.bf16.msra.mxu0 0
  %59 = vmatpush.bf16.msra.mxu0 0
  %60 = vmatpush.bf16.msra.mxu0 0
  %61 = vmatpush.bf16.msra.mxu0 0
  %62 = vmatpush.bf16.msra.mxu0 0
  %63 = vmatpush.bf16.msra.mxu0 0
  %64 = vmatpush.bf16.msra.mxu0 0
  %65 = vmatpush.bf16.msra.mxu0 %v43
  %66 = vmatmul.bf16.gmra.mxu0 %v47
  %v67 = vpop.f32.mrf.mxu0
  %v68 = vadd.f32 %v37, %v67
  %v69 = vpop.f32.mrf.mxu0
  %v70 = vadd.f32 %v37, %v69
  %71 = vmatmul.bf16.gmra.mxu0 %v50
  %v72 = vpop.f32.mrf.mxu0
  %v73 = vadd.f32 %v37, %v72
  %v74 = vpop.f32.mrf.mxu0
  %v75 = vadd.f32 %v37, %v74
  %76 = vmatmul.bf16.gmra.mxu0 %v53
  %v77 = vpop.f32.mrf.mxu0
  %v78 = vadd.f32 %v37, %v77
  %v79 = vpop.f32.mrf.mxu0
  %v80 = vadd.f32 %v37, %v79
  %81 = vmatmul.bf16.gmra.mxu0 %v56
  %v82 = vpop.f32.mrf.mxu0
  %v83 = vadd.f32 %v37, %v82
  %v84 = vpop.f32.mrf.mxu0
  %v85 = vadd.f32 %v37, %v84
  %86 = vdwg.mxu0
  %v87 = vmax.f32 %v68, 0.0
  %v88 = vmax.f32 %v70, 0.0
  %v89 = vmax.f32 %v73, 0.0
  %v90 = vmax.f32 %v75, 0.0
  %v91 = vmax.f32 %v78, 0.0
  %v92 = vmax.f32 %v80, 0.0
  %v93 = vmax.f32 %v83, 0.0
  %v94 = vmax.f32 %v85, 0.0
  %v95 = vpack.c.bf16 %v88, %v87
  %v96 = vpack.c.bf16 %v90, %v89
  %v97 = vpack.c.bf16 %v92, %v91
  %v98 = vpack.c.bf16 %v94, %v93
  %v99 = vld [vmem:[%s3] sm:$0xf]
  %v100 = vld [vmem:[%s3 + $0x4] sm:$0xf]
  %v101 = vld [vmem:[%s3 + $0x8] sm:$0xf]
  %v102 = vld [vmem:[%s3 + $0xc] sm:$0xf]
  %v103 = vld [vmem:[%s3 + $0x10] sm:$0xf]
  %v104 = vld [vmem:[%s3 + $0x14] sm:$0xf]
  %v105 = vld [vmem:[%s3 + $0x18] sm:$0xf]
  %v106 = vld [vmem:[%s3 + $0x1c] sm:$0xf]
  %v107 = vld [vmem:[%s3 + $0x20] sm:$0xf]
  %v108 = vld [vmem:[%s3 + $0x24] sm:$0xf]
  %v109 = vld [vmem:[%s3 + $0x28] sm:$0xf]
  %v110 = vld [vmem:[%s3 + $0x2c] sm:$0xf]
  %v111 = vld [vmem:[%s3 + $0x30] sm:$0xf]
  %v112 = vld [vmem:[%s3 + $0x34] sm:$0xf]
  %v113 = vld [vmem:[%s3 + $0x38] sm:$0xf]
  %v114 = vld [vmem:[%s3 + $0x3c] sm:$0xf]
  %v115 = vld [vmem:[%s4] sm:$0x1]
  %v117 = vperm.slane %v115, 0
  %v135 = vunpack.c.l.b16 %v99
  %v136 = vunpack.c.l.b16 %v100
  %v137 = vunpack.c.l.b16 %v101
  %v138 = vunpack.c.l.b16 %v102
  %v139 = vunpack.c.l.b16 %v103
  %v140 = vunpack.c.l.b16 %v104
  %v141 = vunpack.c.l.b16 %v105
  %v142 = vunpack.c.l.b16 %v106
  %v143 = vunpack.c.l.b16 %v107
  %v144 = vunpack.c.l.b16 %v108
  %v145 = vunpack.c.l.b16 %v109
  %v146 = vunpack.c.l.b16 %v110
  %v147 = vunpack.c.l.b16 %v111
  %v148 = vunpack.c.l.b16 %v112
  %v149 = vunpack.c.l.b16 %v113
  %v150 = vunpack.c.l.b16 %v114
  %v151 = vpack.c.b16 %v136, %v135
  %v152 = vpack.c.b16 %v138, %v137
  %v153 = vpack.c.b16 %v140, %v139
  %v154 = vpack.c.b16 %v142, %v141
  %v155 = vpack.c.b16 %v144, %v143
  %v156 = vpack.c.b16 %v146, %v145
  %v157 = vpack.c.b16 %v148, %v147
  %v158 = vpack.c.b16 %v150, %v149
  %167 = vmatpush.bf16.msra.mxu0 %v158
  %168 = vmatpush.bf16.msra.mxu0 %v157
  %169 = vmatpush.bf16.msra.mxu0 %v156
  %170 = vmatpush.bf16.msra.mxu0 %v155
  %171 = vmatpush.bf16.msra.mxu0 %v154
  %172 = vmatpush.bf16.msra.mxu0 %v153
  %173 = vmatpush.bf16.msra.mxu0 %v152
  %174 = vmatpush.bf16.msra.mxu0 %v151
  %175 = vmatmul.bf16.gmra.mxu0 %v95
  %v176 = vpop.f32.mrf.mxu0
  %v177 = vadd.f32 %v117, %v176
  %v178 = vpop.f32.mrf.mxu0
  %v179 = vadd.f32 %v117, %v178
  %180 = vmatmul.bf16.gmra.mxu0 %v96
  %v181 = vpop.f32.mrf.mxu0
  %v182 = vadd.f32 %v117, %v181
  %v183 = vpop.f32.mrf.mxu0
  %v184 = vadd.f32 %v117, %v183
  %185 = vmatmul.bf16.gmra.mxu0 %v97
  %v186 = vpop.f32.mrf.mxu0
  %v187 = vadd.f32 %v117, %v186
  %v188 = vpop.f32.mrf.mxu0
  %v189 = vadd.f32 %v117, %v188
  %190 = vmatmul.bf16.gmra.mxu0 %v98
  %v191 = vpop.f32.mrf.mxu0
  %v192 = vadd.f32 %v117, %v191
  %v193 = vpop.f32.mrf.mxu0
  %v194 = vadd.f32 %v117, %v193
  %195 = vdwg.mxu0
  %vm196 = vcmask 64512
  %v197 = vsel %vm196, %v177, -inf
  %198 = vmax.xlane.f32.xlu0 %v197
  %v199 = vpop.xlane.xlu0 %198
  %v200 = vsel %vm196, %v179, -inf
  %201 = vmax.xlane.f32.xlu0 %v200
  %v202 = vpop.xlane.xlu0 %201
  %v203 = vsel %vm196, %v182, -inf
  %204 = vmax.xlane.f32.xlu0 %v203
  %v205 = vpop.xlane.xlu0 %204
  %v206 = vsel %vm196, %v184, -inf
  %207 = vmax.xlane.f32.xlu0 %v206
  %v208 = vpop.xlane.xlu0 %207
  %v209 = vsel %vm196, %v187, -inf
  %210 = vmax.xlane.f32.xlu0 %v209
  %v211 = vpop.xlane.xlu0 %210
  %v212 = vsel %vm196, %v189, -inf
  %213 = vmax.xlane.f32.xlu0 %v212
  %v214 = vpop.xlane.xlu0 %213
  %v215 = vsel %vm196, %v192, -inf
  %216 = vmax.xlane.f32.xlu0 %v215
  %v217 = vpop.xlane.xlu0 %216
  %v218 = vsel %vm196, %v194, -inf
  %219 = vmax.xlane.f32.xlu0 %v218
  %v220 = vpop.xlane.xlu0 %219
  %v221 = vsub.f32 %v177, %v199
  %v222 = vsub.f32 %v179, %v202
  %v223 = vsub.f32 %v182, %v205
  %v224 = vsub.f32 %v184, %v208
  %v225 = vsub.f32 %v187, %v211
  %v226 = vsub.f32 %v189, %v214
  %v227 = vsub.f32 %v192, %v217
  %v228 = vsub.f32 %v194, %v220
  %v229 = vmul.f32 %v221, 1.442695
  %v230 = vpow.pop %v229
  %v231 = vmul.f32 %v222, 1.442695
  %v232 = vpow.pop %v231
  %v233 = vmul.f32 %v223, 1.442695
  %v234 = vpow.pop %v233
  %v235 = vmul.f32 %v224, 1.442695
  %v236 = vpow.pop %v235
  %v237 = vmul.f32 %v225, 1.442695
  %v238 = vpow.pop %v237
  %v239 = vmul.f32 %v226, 1.442695
  %v240 = vpow.pop %v239
  %v241 = vmul.f32 %v227, 1.442695
  %v242 = vpow.pop %v241
  %v243 = vmul.f32 %v228, 1.442695
  %v244 = vpow.pop %v243
  %v245 = vsel %vm196, %v230, 0.0
  %246 = vadd.xlane.f32.xlu0 %v245
  %v247 = vpop.xlane.xlu0 %246
  %v248 = vsel %vm196, %v232, 0.0
  %249 = vadd.xlane.f32.xlu0 %v248
  %v250 = vpop.xlane.xlu0 %249
  %v251 = vsel %vm196, %v234, 0.0
  %252 = vadd.xlane.f32.xlu0 %v251
  %v253 = vpop.xlane.xlu0 %252
  %v254 = vsel %vm196, %v236, 0.0
  %255 = vadd.xlane.f32.xlu0 %v254
  %v256 = vpop.xlane.xlu0 %255
  %v257 = vsel %vm196, %v238, 0.0
  %258 = vadd.xlane.f32.xlu0 %v257
  %v259 = vpop.xlane.xlu0 %258
  %v260 = vsel %vm196, %v240, 0.0
  %261 = vadd.xlane.f32.xlu0 %v260
  %v262 = vpop.xlane.xlu0 %261
  %v263 = vsel %vm196, %v242, 0.0
  %264 = vadd.xlane.f32.xlu0 %v263
  %v265 = vpop.xlane.xlu0 %264
  %v266 = vsel %vm196, %v244, 0.0
  %267 = vadd.xlane.f32.xlu0 %v266
  %v268 = vpop.xlane.xlu0 %267
  %v269 = vrcp.pop %v247
  %v270 = vrcp.pop %v250
  %v271 = vrcp.pop %v253
  %v272 = vrcp.pop %v256
  %v273 = vrcp.pop %v259
  %v274 = vrcp.pop %v262
  %v275 = vrcp.pop %v265
  %v276 = vrcp.pop %v268
  %v277 = vmul.f32 %v247, %v269
  %v278 = vmul.f32 %v250, %v270
  %v279 = vmul.f32 %v253, %v271
  %v280 = vmul.f32 %v256, %v272
  %v281 = vmul.f32 %v259, %v273
  %v282 = vmul.f32 %v262, %v274
  %v283 = vmul.f32 %v265, %v275
  %v284 = vmul.f32 %v268, %v276
  %v285 = vsub.f32 2.0, %v277
  %v286 = vsub.f32 2.0, %v278
  %v287 = vsub.f32 2.0, %v279
  %v288 = vsub.f32 2.0, %v280
  %v289 = vsub.f32 2.0, %v281
  %v290 = vsub.f32 2.0, %v282
  %v291 = vsub.f32 2.0, %v283
  %v292 = vsub.f32 2.0, %v284
  %v293 = vmul.f32 %v269, %v285
  %v294 = vmul.f32 %v270, %v286
  %v295 = vmul.f32 %v271, %v287
  %v296 = vmul.f32 %v272, %v288
  %v297 = vmul.f32 %v273, %v289
  %v298 = vmul.f32 %v274, %v290
  %v299 = vmul.f32 %v275, %v291
  %v300 = vmul.f32 %v276, %v292
  %v301 = vmul.f32 %v230, %v293
  %v302 = vmul.f32 %v232, %v294
  %v303 = vmul.f32 %v234, %v295
  %v304 = vmul.f32 %v236, %v296
  %v305 = vmul.f32 %v238, %v297
  %v306 = vmul.f32 %v240, %v298
  %v307 = vmul.f32 %v242, %v299
  %v308 = vmul.f32 %v244, %v300
  %309 = vst.msk [vmem:[%s5] sm:$0xff] %vm196, %v301
  %310 = vst.msk [vmem:[%s5 + $0x8] sm:$0xff] %vm196, %v302
  %311 = vst.msk [vmem:[%s5 + $0x10] sm:$0xff] %vm196, %v303
  %312 = vst.msk [vmem:[%s5 + $0x18] sm:$0xff] %vm196, %v304
  %313 = vst.msk [vmem:[%s5 + $0x20] sm:$0xff] %vm196, %v305
  %314 = vst.msk [vmem:[%s5 + $0x28] sm:$0xff] %vm196, %v306
  %315 = vst.msk [vmem:[%s5 + $0x30] sm:$0xff] %vm196, %v307
  %316 = vst.msk [vmem:[%s5 + $0x38] sm:$0xff] %vm196, %v308
  // Predicated region
  $region22: #{policy_forward.1} parent=0 // pred_check
    _
  $region23: #{policy_forward.1} parent=0 // pred_check_branch
    %318 = sbr.rel (0) target = $region25
  $region24: #{policy_forward.1} parent=0 // pred_region
    _
  $region25: #{policy_forward.1} parent=0 // pred_fallthru
    _
  // Predicated region
  $region26: #{policy_forward.1} parent=0 // pred_check
    _
  $region27: #{policy_forward.1} parent=0 // pred_check_branch
    %320 = sbr.rel (0) target = $region29
  $region28: #{policy_forward.1} parent=0 // pred_region
    _
  $region29: #{policy_forward.1} parent=0 // pred_fallthru
    _

</llo_original>
